<compile_context>
chip_gen: v6e
topology: v6e:2x2x1
jax: 0.10.0
libtpu: 0.0.40
codegen_flags: <defaults>
</compile_context>

<pallas_src>
import functools

import jax
import jax.numpy as jnp
from jax.experimental import pallas as pl
from jax.experimental.pallas import tpu as pltpu

_LANES = 128
_SUBLANES = 8
_NUM_SPLITS = 2          # leading "parallel" grid axis (lets v7x's 2 TCs split the stream)


def _ace_loss_kernel(ptr_ref, ref_e_ref, pred_e_ref, ref_f_ref, pred_f_ref,
                     out_ref, acc_ref, *, w_e_sq, w_f_sq, inv_n):
    """Per-tile body.

    ptr_ref      : VMEM i32[1, G+1]      graph pointer
    ref_e/pred_e : VMEM f32[1, G]        per-graph energies
    ref_f/pred_f : VMEM f[T, 128]        lane-dense tile of the flattened forces
    out_ref      : VMEM f32[1, 8, 128]   per-split partial loss (broadcast-filled)
    acc_ref      : VMEM f32[8, 128]      per-lane running sum of squared force error
    """
    split = pl.program_id(0)
    k = pl.program_id(1)
    nk = pl.num_programs(1)

    @pl.when(k == 0)
    def _init():
        acc_ref[...] = jnp.zeros_like(acc_ref)

    # Streaming force term: pure per-lane VPU work; the cross-lane reduce is deferred.
    d_f = ref_f_ref[...].astype(jnp.float32) - pred_f_ref[...].astype(jnp.float32)
    sq = d_f * d_f
    acc_ref[...] += jnp.sum(sq.reshape(-1, _SUBLANES, _LANES), axis=0)

    @pl.when(k == nk - 1)
    def _finalize():
        c_f = jnp.sum(acc_ref[...])      # single cross-lane reduction per split

        @pl.when(split == 0)
        def _with_energy():
            # num_atoms = ptr[1:] - ptr[:-1]; energy term computed exactly once.
            ptr_vals = ptr_ref[...]
            num_atoms = (ptr_vals[:, 1:] - ptr_vals[:, :-1]).astype(jnp.float32)
            d_e = ref_e_ref[...] - pred_e_ref[...]
            c_e = jnp.sum(d_e * d_e * pl.reciprocal(num_atoms, approx=False))
            loss = (w_e_sq * c_e + w_f_sq * c_f) * inv_n
            out_ref[...] = jnp.broadcast_to(loss, out_ref.shape).astype(out_ref.dtype)

        @pl.when(split != 0)
        def _forces_only():
            loss = (w_f_sq * c_f) * inv_n
            out_ref[...] = jnp.broadcast_to(loss, out_ref.shape).astype(out_ref.dtype)


def _round_up(x, m):
    return -(-x // m) * m


def ace_loss(ptr, ref_energy, pred_energy, ref_forces, pred_forces,
             energy_weight=1.0, forces_weight=1.0, *, max_tile_rows=512):
    """Pallas implementation of ACELoss.forward.

    ptr:          int  (G+1,)   graph pointer (ref.ptr)
    ref_energy:   f32  (G,)     ref['energy']
    pred_energy:  f32  (G,)     pred['energy']
    ref_forces:   f32  (N, 3)   ref['forces']
    pred_forces:  f32  (N, 3)   pred['forces']
    """
    G = ref_energy.shape[0]
    N = ref_forces.shape[0]              # len(ref.batch) == total number of atoms
    total = ref_forces.size              # 3 * N force components

    # ---- lane-dense layout for the streamed force arrays -----------------------
    rows = _round_up(max(_SUBLANES, -(-total // _LANES)), _SUBLANES)
    tile_rows = min(_round_up(max_tile_rows, _SUBLANES), rows)
    rows_padded = _round_up(rows, tile_rows * _NUM_SPLITS)
    padded_elems = rows_padded * _LANES
    steps = rows_padded // (tile_rows * _NUM_SPLITS)

    def to_slab(f):
        flat = f.reshape(-1)
        flat = jnp.pad(flat, (0, padded_elems - total))  # pads contribute 0 to the sum
        return flat.reshape(rows_padded, _LANES)

    ref_f = to_slab(ref_forces)
    pred_f = to_slab(pred_forces)

    ptr_2d = ptr.astype(jnp.int32).reshape(1, G + 1)
    ref_e = ref_energy.astype(jnp.float32).reshape(1, G)
    pred_e = pred_energy.astype(jnp.float32).reshape(1, G)

    # Registered-buffer-style constants (set at module construction in torch) baked in.
    kernel = functools.partial(
        _ace_loss_kernel,
        w_e_sq=float(energy_weight) ** 2,
        w_f_sq=float(forces_weight) ** 2,
        inv_n=1.0 / float(N),
    )

    force_spec = pl.BlockSpec((tile_rows, _LANES), lambda s, k: (s * steps + k, 0))

    partials = pl.pallas_call(
        kernel,
        out_shape=jax.ShapeDtypeStruct((_NUM_SPLITS, _SUBLANES, _LANES), jnp.float32),
        grid_spec=pltpu.PrefetchScalarGridSpec(
            num_scalar_prefetch=0,
            grid=(_NUM_SPLITS, steps),
            in_specs=[
                pl.BlockSpec((1, G + 1), lambda s, k: (0, 0)),   # ptr (resident)
                pl.BlockSpec((1, G), lambda s, k: (0, 0)),       # ref energy (resident)
                pl.BlockSpec((1, G), lambda s, k: (0, 0)),       # pred energy (resident)
                force_spec,                                      # ref forces slab (streamed)
                force_spec,                                      # pred forces slab (streamed)
            ],
            out_specs=pl.BlockSpec((1, _SUBLANES, _LANES), lambda s, k: (s, 0, 0)),
            scratch_shapes=[pltpu.VMEM((_SUBLANES, _LANES), jnp.float32)],
        ),
        compiler_params=pltpu.CompilerParams(
            dimension_semantics=("parallel", "arbitrary")),
    )(ptr_2d, ref_e, pred_e, ref_f, pred_f)

    # Combine the per-split partial losses (trivial 2-element reduce).
    return jnp.sum(partials[:, 0, 0])


def ace_loss_ref(ptr, ref_energy, pred_energy, ref_forces, pred_forces,
                 energy_weight=1.0, forces_weight=1.0):
    """Pure-JAX reference mirroring the torch forward."""
    num_atoms = (ptr[1:] - ptr[:-1]).astype(jnp.float32)
    c_e = jnp.sum(jnp.square(ref_energy - pred_energy) / num_atoms)
    c_f = jnp.sum(jnp.square(ref_forces - pred_forces))
    n_batch = ref_forces.shape[0]
    return (energy_weight ** 2 * c_e + forces_weight ** 2 * c_f) / n_batch


if __name__ == "__main__":
    key = jax.random.PRNGKey(0)
    k1, k2, k3, k4 = jax.random.split(key, 4)

    # Case 1: small synthetic batch — 2 graphs with 3 and 5 atoms -> 8 atoms total.
    ptr = jnp.array([0, 3, 8], dtype=jnp.int32)          # (G+1,)
    G, N = 2, 8                                          # N == ptr[-1], kept static

    ref_energy = jax.random.normal(k1, (G,), dtype=jnp.float32)
    pred_energy = jax.random.normal(k2, (G,), dtype=jnp.float32)
    ref_forces = jax.random.normal(k3, (N, 3), dtype=jnp.float32)
    pred_forces = jax.random.normal(k4, (N, 3), dtype=jnp.float32)

    energy_weight, forces_weight = 1.5, 0.7

    loss = ace_loss(ptr, ref_energy, pred_energy, ref_forces, pred_forces,
                    energy_weight=energy_weight, forces_weight=forces_weight)
    loss = jax.block_until_ready(loss)
    expected = ace_loss_ref(ptr, ref_energy, pred_energy, ref_forces, pred_forces,
                            energy_weight=energy_weight, forces_weight=forces_weight)
    assert jnp.allclose(loss, expected, rtol=1e-5, atol=1e-6), (loss, expected)

    # Case 2: more atoms + a tiny tile so the multi-step pipelined reduction grid
    # (steps > 1) and both parallel splits are exercised.
    k5, k6, k7, k8 = jax.random.split(jax.random.PRNGKey(1), 4)
    ptr2 = jnp.array([0, 100, 350, 800], dtype=jnp.int32)
    G2, N2 = 3, 800
    ref_e2 = jax.random.normal(k5, (G2,), dtype=jnp.float32)
    pred_e2 = jax.random.normal(k6, (G2,), dtype=jnp.float32)
    ref_f2 = jax.random.normal(k7, (N2, 3), dtype=jnp.float32)
    pred_f2 = jax.random.normal(k8, (N2, 3), dtype=jnp.float32)

    loss2 = ace_loss(ptr2, ref_e2, pred_e2, ref_f2, pred_f2,
                     energy_weight=energy_weight, forces_weight=forces_weight,
                     max_tile_rows=8)
    loss2 = jax.block_until_ready(loss2)
    expected2 = ace_loss_ref(ptr2, ref_e2, pred_e2, ref_f2, pred_f2,
                             energy_weight=energy_weight, forces_weight=forces_weight)
    assert jnp.allclose(loss2, expected2, rtol=1e-5, atol=1e-5), (loss2, expected2)

    print("KERNEL_OK")
</pallas_src>

<mosaic_0001>
module attributes {stable_mosaic.version = 11 : i64} {
  func.func @_ace_loss_kernel(%arg0: i32, %arg1: i32, %arg2: memref<1x3xi32, #tpu.memory_space<vmem>>, %arg3: memref<1x2xf32, #tpu.memory_space<vmem>>, %arg4: memref<1x2xf32, #tpu.memory_space<vmem>>, %arg5: memref<8x128xf32, #tpu.memory_space<vmem>>, %arg6: memref<8x128xf32, #tpu.memory_space<vmem>>, %arg7: memref<1x8x128xf32, #tpu.memory_space<vmem>>, %arg8: memref<8x128xf32, #tpu.memory_space<vmem>>) attributes {dimension_semantics = [#tpu.dimension_semantics<parallel>, #tpu.dimension_semantics<arbitrary>], iteration_bounds = array<i64: 2, 1>, scalar_prefetch = 0 : i64, scratch_operands = 1 : i64, tpu.core_type = #tpu.core_type<tc>, window_params = [{pipeline_mode = #tpu.pipeline_mode<synchronous>, transform_indices = @transform_0, window_bounds = array<i64: 1, 3>}, {pipeline_mode = #tpu.pipeline_mode<synchronous>, transform_indices = @transform_1, window_bounds = array<i64: 1, 2>}, {pipeline_mode = #tpu.pipeline_mode<synchronous>, transform_indices = @transform_2, window_bounds = array<i64: 1, 2>}, {transform_indices = @transform_3, window_bounds = array<i64: 8, 128>}, {transform_indices = @transform_4, window_bounds = array<i64: 8, 128>}, {transform_indices = @transform_5, window_bounds = array<i64: 1, 8, 128>}]} {
    %c0_i32 = arith.constant 0 : i32
    %0 = arith.cmpi eq, %arg1, %c0_i32 : i32
    %1 = arith.extui %0 : i1 to i32
    %c0_i32_0 = arith.constant 0 : i32
    %2 = arith.cmpi ne, %1, %c0_i32_0 : i32
    scf.if %2 {
      %cst_10 = arith.constant 0.000000e+00 : f32
      %15 = vector.broadcast %cst_10 : f32 to vector<8x128xf32>
      %c0_11 = arith.constant 0 : index
      %c0_12 = arith.constant 0 : index
      %16 = vector.load %arg8[%c0_11, %c0_12] : memref<8x128xf32, #tpu.memory_space<vmem>>, vector<8x128xf32>
      tpu.vector_store %arg8[%c0_11, %c0_12], %15 {strides = array<i32>} : memref<8x128xf32, #tpu.memory_space<vmem>>, vector<8x128xf32>,
    } else {
    }
    %c0 = arith.constant 0 : index
    %c0_1 = arith.constant 0 : index
    %3 = vector.load %arg5[%c0, %c0_1] : memref<8x128xf32, #tpu.memory_space<vmem>>, vector<8x128xf32>
    %c0_2 = arith.constant 0 : index
    %c0_3 = arith.constant 0 : index
    %4 = vector.load %arg6[%c0_2, %c0_3] : memref<8x128xf32, #tpu.memory_space<vmem>>, vector<8x128xf32>
    %5 = arith.subf %3, %4 : vector<8x128xf32>
    %6 = arith.mulf %5, %5 : vector<8x128xf32>
    %c0_4 = arith.constant 0 : index
    %c0_5 = arith.constant 0 : index
    %7 = vector.load %arg8[%c0_4, %c0_5] : memref<8x128xf32, #tpu.memory_space<vmem>>, vector<8x128xf32>
    %8 = vector.shape_cast %6 : vector<8x128xf32> to vector<1x8x128xf32>
    %cst = arith.constant dense<0.000000e+00> : vector<8x128xf32>
    %9 = vector.multi_reduction <add>, %8, %cst [0] : vector<1x8x128xf32> to vector<8x128xf32>
    %10 = arith.addf %7, %9 : vector<8x128xf32>
    %c0_6 = arith.constant 0 : index
    %c0_7 = arith.constant 0 : index
    %11 = vector.load %arg8[%c0_6, %c0_7] : memref<8x128xf32, #tpu.memory_space<vmem>>, vector<8x128xf32>
    tpu.vector_store %arg8[%c0_6, %c0_7], %10 {strides = array<i32>} : memref<8x128xf32, #tpu.memory_space<vmem>>, vector<8x128xf32>,
    %c0_i32_8 = arith.constant 0 : i32
    %12 = arith.cmpi eq, %arg1, %c0_i32_8 : i32
    %13 = arith.extui %12 : i1 to i32
    %c0_i32_9 = arith.constant 0 : i32
    %14 = arith.cmpi ne, %13, %c0_i32_9 : i32
    scf.if %14 {
      %c0_10 = arith.constant 0 : index
      %c0_11 = arith.constant 0 : index
      %15 = vector.load %arg8[%c0_10, %c0_11] : memref<8x128xf32, #tpu.memory_space<vmem>>, vector<8x128xf32>
      %16 = vector.shape_cast %15 : vector<8x128xf32> to vector<1x8x128xf32>
      %cst_12 = arith.constant dense<0.000000e+00> : vector<1xf32>
      %17 = vector.multi_reduction <add>, %16, %cst_12 [1, 2] : vector<1x8x128xf32> to vector<1xf32>
      %18 = vector.shape_cast %17 : vector<1xf32> to vector<1x1x1xf32>
      %19 = vector.extract %18[0, 0, 0] : f32 from vector<1x1x1xf32>
      %c0_i32_13 = arith.constant 0 : i32
      %20 = arith.cmpi eq, %arg0, %c0_i32_13 : i32
      %21 = arith.extui %20 : i1 to i32
      %c0_i32_14 = arith.constant 0 : i32
      %22 = arith.cmpi ne, %21, %c0_i32_14 : i32
      scf.if %22 {
        %c0_17 = arith.constant 0 : index
        %c0_18 = arith.constant 0 : index
        %26 = vector.load %arg2[%c0_17, %c0_18] : memref<1x3xi32, #tpu.memory_space<vmem>>, vector<1x3xi32>
        %27 = vector.extract_strided_slice %26 {offsets = [0, 1], sizes = [1, 2], strides = [1, 1]} : vector<1x3xi32> to vector<1x2xi32>
        %28 = vector.extract_strided_slice %26 {offsets = [0, 0], sizes = [1, 2], strides = [1, 1]} : vector<1x3xi32> to vector<1x2xi32>
        %29 = arith.subi %27, %28 : vector<1x2xi32>
        %30 = arith.sitofp %29 : vector<1x2xi32> to vector<1x2xf32>
        %c0_19 = arith.constant 0 : index
        %c0_20 = arith.constant 0 : index
        %31 = vector.load %arg3[%c0_19, %c0_20] : memref<1x2xf32, #tpu.memory_space<vmem>>, vector<1x2xf32>
        %c0_21 = arith.constant 0 : index
        %c0_22 = arith.constant 0 : index
        %32 = vector.load %arg4[%c0_21, %c0_22] : memref<1x2xf32, #tpu.memory_space<vmem>>, vector<1x2xf32>
        %33 = arith.subf %31, %32 : vector<1x2xf32>
        %34 = arith.mulf %33, %33 : vector<1x2xf32>
        %35 = tpu.reciprocal %30 : vector<1x2xf32> -> vector<1x2xf32>
        %36 = arith.mulf %34, %35 : vector<1x2xf32>
        %37 = vector.shape_cast %36 : vector<1x2xf32> to vector<1x1x2xf32>
        %cst_23 = arith.constant dense<0.000000e+00> : vector<1xf32>
        %38 = vector.multi_reduction <add>, %37, %cst_23 [1, 2] : vector<1x1x2xf32> to vector<1xf32>
        %39 = vector.shape_cast %38 : vector<1xf32> to vector<1x1x1xf32>
        %40 = vector.extract %39[0, 0, 0] : f32 from vector<1x1x1xf32>
        %cst_24 = arith.constant 2.250000e+00 : f32
        %41 = arith.mulf %cst_24, %40 : f32
        %cst_25 = arith.constant 4.900000e-01 : f32
        %42 = arith.mulf %cst_25, %19 : f32
        %43 = arith.addf %41, %42 : f32
        %cst_26 = arith.constant 1.250000e-01 : f32
        %44 = arith.mulf %43, %cst_26 : f32
        %45 = vector.broadcast %44 : f32 to vector<1x8x128xf32>
        %c0_27 = arith.constant 0 : index
        %c0_28 = arith.constant 0 : index
        %c0_29 = arith.constant 0 : index
        %46 = vector.load %arg7[%c0_27, %c0_28, %c0_29] : memref<1x8x128xf32, #tpu.memory_space<vmem>>, vector<1x8x128xf32>
        tpu.vector_store %arg7[%c0_27, %c0_28, %c0_29], %45 {strides = array<i32>} : memref<1x8x128xf32, #tpu.memory_space<vmem>>, vector<1x8x128xf32>,
      } else {
      }
      %c0_i32_15 = arith.constant 0 : i32
      %23 = arith.cmpi ne, %arg0, %c0_i32_15 : i32
      %24 = arith.extui %23 : i1 to i32
      %c0_i32_16 = arith.constant 0 : i32
      %25 = arith.cmpi ne, %24, %c0_i32_16 : i32
      scf.if %25 {
        %cst_17 = arith.constant 4.900000e-01 : f32
        %26 = arith.mulf %cst_17, %19 : f32
        %cst_18 = arith.constant 1.250000e-01 : f32
        %27 = arith.mulf %26, %cst_18 : f32
        %28 = vector.broadcast %27 : f32 to vector<1x8x128xf32>
        %c0_19 = arith.constant 0 : index
        %c0_20 = arith.constant 0 : index
        %c0_21 = arith.constant 0 : index
        %29 = vector.load %arg7[%c0_19, %c0_20, %c0_21] : memref<1x8x128xf32, #tpu.memory_space<vmem>>, vector<1x8x128xf32>
        tpu.vector_store %arg7[%c0_19, %c0_20, %c0_21], %28 {strides = array<i32>} : memref<1x8x128xf32, #tpu.memory_space<vmem>>, vector<1x8x128xf32>,
      } else {
      }
    } else {
    }
    return
  }
  func.func @transform_0(%arg0: i32, %arg1: i32) -> (i32, i32) {
    %c0_i32 = arith.constant 0 : i32
    %c0_i32_0 = arith.constant 0 : i32
    %c0_i32_1 = arith.constant 0 : i32
    return %c0_i32, %c0_i32_0 : i32, i32
  }
  func.func @transform_1(%arg0: i32, %arg1: i32) -> (i32, i32) {
    %c0_i32 = arith.constant 0 : i32
    %c0_i32_0 = arith.constant 0 : i32
    %c0_i32_1 = arith.constant 0 : i32
    return %c0_i32, %c0_i32_0 : i32, i32
  }
  func.func @transform_2(%arg0: i32, %arg1: i32) -> (i32, i32) {
    %c0_i32 = arith.constant 0 : i32
    %c0_i32_0 = arith.constant 0 : i32
    %c0_i32_1 = arith.constant 0 : i32
    return %c0_i32, %c0_i32_0 : i32, i32
  }
  func.func @transform_3(%arg0: i32, %arg1: i32) -> (i32, i32) {
    %c1_i32 = arith.constant 1 : i32
    %0 = arith.muli %arg0, %c1_i32 : i32
    %1 = arith.addi %0, %arg1 : i32
    %c0_i32 = arith.constant 0 : i32
    %c0_i32_0 = arith.constant 0 : i32
    return %1, %c0_i32 : i32, i32
  }
  func.func @transform_4(%arg0: i32, %arg1: i32) -> (i32, i32) {
    %c1_i32 = arith.constant 1 : i32
    %0 = arith.muli %arg0, %c1_i32 : i32
    %1 = arith.addi %0, %arg1 : i32
    %c0_i32 = arith.constant 0 : i32
    %c0_i32_0 = arith.constant 0 : i32
    return %1, %c0_i32 : i32, i32
  }
  func.func @transform_5(%arg0: i32, %arg1: i32) -> (i32, i32, i32) {
    %c0_i32 = arith.constant 0 : i32
    %c0_i32_0 = arith.constant 0 : i32
    %c0_i32_1 = arith.constant 0 : i32
    return %arg0, %c0_i32, %c0_i32_0 : i32, i32, i32
  }
}

</mosaic_0001>

<llo_original>
// kernel: tpu_custom_call.1
$region0: #{tpu_custom_call.1}
  #allocation0 [shape = 'u32[]', space=smem, size = 0x4, offset = 0x4, fixed_abs, tag = 'smem constant byte address 0x4 - core index']
  #allocation1 [shape = 'u32[144,128]{1,0:T(1,128)}', space=vmem, size = 0x12000, scoped, tag = 'internal scratch']
  #allocation2 [shape = 'f32[8,128]{1,0:T(8,128)}', space=vmem, size = 0x1000, scoped, tag = 'scratch operand']
  %s0 = inlined_call_operand.hbm [shape: s32[1,3], index: 0, kind: input, shape index: {}]
  %s1 = inlined_call_operand.vmem [shape: f32[1,2], index: 1, kind: input, shape index: {}]
  %s2 = inlined_call_operand.vmem [shape: f32[1,2], index: 2, kind: input, shape index: {}]
  %s3 = inlined_call_operand.hbm [shape: f32[16,128], index: 3, kind: input, shape index: {}]
  %s4 = inlined_call_operand.hbm [shape: f32[16,128], index: 4, kind: input, shape index: {}]
  %s5 = inlined_call_operand.hbm [shape: f32[2,8,128], index: 5, kind: output, shape index: {}]
  %s6 = sld [smem:[#allocation0]]
  $region81: #{tpu_custom_call.1} parent=0
    _
  %s8 = ssub.s32 1, %s6
  %s9 = scalar_select 0, %s8, %s6
  $region1: #{tpu_custom_call.1} parent=0
    #allocation3 [shape = 'u8[512]{0}', space=vmem, size = 0x400, scoped, tag = 'input window, operand 0, single buffered']
    #allocation4 [shape = 's32[2]{0}', space=sflag, size = 0x8, scoped, tag = 'scoped memory for tpu_custom_call.1']
    #allocation5 [shape = 's32[2]{0}', space=sflag, size = 0x8, scoped, tag = 'scoped memory for tpu_custom_call.1']
    #allocation6 [shape = 'u8[8192]{0}', space=vmem, size = 0x2000, scoped, tag = 'input window, operand 3']
    #allocation7 [shape = 's32[2]{0}', space=sflag, size = 0x8, scoped, tag = 'scoped memory for tpu_custom_call.1']
    #allocation8 [shape = 'u8[8192]{0}', space=vmem, size = 0x2000, scoped, tag = 'input window, operand 4']
    #allocation9 [shape = 'u8[8192]{0}', space=vmem, size = 0x2000, scoped, tag = 'output window, operand 0']
    %10 = vsyncpa [#allocation4], 0
    %11 = vsyncpa [#allocation7], 0
    %s12 = scalar_lea.sflag [#allocation7], 1
    %13 = vsyncpa %s12, 0
    %14 = vsyncpa [#allocation5], 0
    %s15 = scalar_lea.sflag [#allocation5], 1
    %16 = vsyncpa %s15, 0
    loop: start=0, step=1, limit=4
    $region2: #{tpu_custom_call.1} parent=1 // loop_pre_header
      _
    $region3: #{tpu_custom_call.1} parent=1 // loop_header
      %s18 = sphi 0, %s22
      %p19 = scmp.ge.s32.totalorder %s18, 4
      %s25 = sphi 0, %s37
      %s26 = sphi 0, %s33
      %s27 = sphi 0, %s25
      %s28 = sphi 0, %s26
      %s29 = sphi 0, %s27
      %s30 = sphi 0, %s28
      %s38 = sphi 0, %s38
      %s40 = sphi 0, %s38
      %s41 = sphi 0, %s40
      %s55 = sphi 0, %s41
      %s59 = sphi 0, %s59
      %s61 = sphi 0, %s59
      %s62 = sphi 0, %s61
      %s76 = sphi 0, %s62
      %s80 = sphi 0, %s80
      %s82 = sphi 0, %s80
      %s83 = sphi 0, %s82
      %s97 = sphi 0, %s83
      %s105 = sphi 0, %s107
      %s108 = sphi 0, %s105
      %s109 = sphi 0, %s108
      %s125 = sphi 0, %s109
      %s133 = sphi 0, %s135
      %s136 = sphi 0, %s133
      %s137 = sphi 0, %s136
      %s153 = sphi 0, %s137
      %s159 = sphi 0, %s161
      %s162 = sphi 0, %s159
      %s163 = sphi 0, %s162
      %s179 = sphi 0, %s163
    $region4: #{tpu_custom_call.1} parent=1 // loop_header_branch
      %21 = sbr.rel (%p19) target = $region8
    $region5: #{tpu_custom_call.1} parent=1 // loop_body
      %s23 = ssub.s32 %s18, 1
      %s24 = ssub.s32 %s18, 2
      %s31 = sadd.s32 1, %s26
      %p32 = scmp.ge.s32.totalorder %s31, 1
      %s33 = scalar_select %p32, 0, %s31
      %s34 = sadd.s32 1, %s25
      %s35 = scalar_select %p32, %s34, %s25
      %p36 = scmp.ge.s32.totalorder %s35, 2
      %s37 = scalar_select %p36, 0, %s35
      %s39 = sadd.s32 %s38, 1
      %p42 = scmp.eq.s32.totalorder %s18, 1
      %p43 = scmp.ne.s32.totalorder %s38, %s40
      %p44 = scmp.eq.s32.totalorder %s18, 0
      %p45 = por %p43, %p44
      %p46 = scmp.ne.s32.totalorder %s38, %s40
      %p47 = scmp.eq.s32.totalorder %s23, 1
      %p48 = por %p46, %p47
      %p49 = scmp.ne.s32.totalorder %s40, %s41
      %p50 = scmp.eq.s32.totalorder %s23, 0
      %p51 = por %p49, %p50
      %p52 = scmp.ne.s32.totalorder %s40, %s41
      %p53 = scmp.eq.s32.totalorder %s24, 1
      %p54 = por %p52, %p53
      %p56 = scmp.ne.s32.totalorder %s41, %s55
      %p57 = scmp.eq.s32.totalorder %s24, 0
      %p58 = por %p56, %p57
      %s60 = sadd.s32 %s59, 1
      %p63 = scmp.eq.s32.totalorder %s18, 1
      %p64 = scmp.ne.s32.totalorder %s59, %s61
      %p65 = scmp.eq.s32.totalorder %s18, 0
      %p66 = por %p64, %p65
      %p67 = scmp.ne.s32.totalorder %s59, %s61
      %p68 = scmp.eq.s32.totalorder %s23, 1
      %p69 = por %p67, %p68
      %p70 = scmp.ne.s32.totalorder %s61, %s62
      %p71 = scmp.eq.s32.totalorder %s23, 0
      %p72 = por %p70, %p71
      %p73 = scmp.ne.s32.totalorder %s61, %s62
      %p74 = scmp.eq.s32.totalorder %s24, 1
      %p75 = por %p73, %p74
      %p77 = scmp.ne.s32.totalorder %s62, %s76
      %p78 = scmp.eq.s32.totalorder %s24, 0
      %p79 = por %p77, %p78
      %s81 = sadd.s32 %s80, 1
      %p84 = scmp.eq.s32.totalorder %s18, 1
      %p85 = scmp.ne.s32.totalorder %s80, %s82
      %p86 = scmp.eq.s32.totalorder %s18, 0
      %p87 = por %p85, %p86
      %p88 = scmp.ne.s32.totalorder %s80, %s82
      %p89 = scmp.eq.s32.totalorder %s23, 1
      %p90 = por %p88, %p89
      %p91 = scmp.ne.s32.totalorder %s82, %s83
      %p92 = scmp.eq.s32.totalorder %s23, 0
      %p93 = por %p91, %p92
      %p94 = scmp.ne.s32.totalorder %s82, %s83
      %p95 = scmp.eq.s32.totalorder %s24, 1
      %p96 = por %p94, %p95
      %p98 = scmp.ne.s32.totalorder %s83, %s97
      %p99 = scmp.eq.s32.totalorder %s24, 0
      %p100 = por %p98, %p99
      %s101 = sadd.s32 %s25, %s26
      %s102 = sadd.s32 %s37, %s33
      %s103 = ssub.s32 %s101, %s102
      %p104 = scmp.eq.s32.totalorder %s103, 0
      %s106 = sadd.s32 %s105, 1
      %s107 = scalar_select %p104, %s105, %s106
      %p110 = pneg %p104
      %p111 = scmp.eq.s32.totalorder %s18, 1
      %p112 = por %p110, %p111
      %p113 = scmp.ne.s32.totalorder %s105, %s108
      %p114 = scmp.eq.s32.totalorder %s18, 0
      %p115 = por %p113, %p114
      %p116 = scmp.ne.s32.totalorder %s105, %s108
      %p117 = scmp.eq.s32.totalorder %s23, 1
      %p118 = por %p116, %p117
      %p119 = scmp.ne.s32.totalorder %s108, %s109
      %p120 = scmp.eq.s32.totalorder %s23, 0
      %p121 = por %p119, %p120
      %p122 = scmp.ne.s32.totalorder %s108, %s109
      %p123 = scmp.eq.s32.totalorder %s24, 1
      %p124 = por %p122, %p123
      %p126 = scmp.ne.s32.totalorder %s109, %s125
      %p127 = scmp.eq.s32.totalorder %s24, 0
      %p128 = por %p126, %p127
      %s129 = sadd.s32 %s25, %s26
      %s130 = sadd.s32 %s37, %s33
      %s131 = ssub.s32 %s129, %s130
      %p132 = scmp.eq.s32.totalorder %s131, 0
      %s134 = sadd.s32 %s133, 1
      %s135 = scalar_select %p132, %s133, %s134
      %p138 = pneg %p132
      %p139 = scmp.eq.s32.totalorder %s18, 1
      %p140 = por %p138, %p139
      %p141 = scmp.ne.s32.totalorder %s133, %s136
      %p142 = scmp.eq.s32.totalorder %s18, 0
      %p143 = por %p141, %p142
      %p144 = scmp.ne.s32.totalorder %s133, %s136
      %p145 = scmp.eq.s32.totalorder %s23, 1
      %p146 = por %p144, %p145
      %p147 = scmp.ne.s32.totalorder %s136, %s137
      %p148 = scmp.eq.s32.totalorder %s23, 0
      %p149 = por %p147, %p148
      %p150 = scmp.ne.s32.totalorder %s136, %s137
      %p151 = scmp.eq.s32.totalorder %s24, 1
      %p152 = por %p150, %p151
      %p154 = scmp.ne.s32.totalorder %s137, %s153
      %p155 = scmp.eq.s32.totalorder %s24, 0
      %p156 = por %p154, %p155
      %s157 = ssub.s32 %s25, %s37
      %p158 = scmp.eq.s32.totalorder %s157, 0
      %s160 = sadd.s32 %s159, 1
      %s161 = scalar_select %p158, %s159, %s160
      %p164 = pneg %p158
      %p165 = scmp.eq.s32.totalorder %s18, 1
      %p166 = por %p164, %p165
      %p167 = scmp.ne.s32.totalorder %s159, %s162
      %p168 = scmp.eq.s32.totalorder %s18, 0
      %p169 = por %p167, %p168
      %p170 = scmp.ne.s32.totalorder %s159, %s162
      %p171 = scmp.eq.s32.totalorder %s23, 1
      %p172 = por %p170, %p171
      %p173 = scmp.ne.s32.totalorder %s162, %s163
      %p174 = scmp.eq.s32.totalorder %s23, 0
      %p175 = por %p173, %p174
      %p176 = scmp.ne.s32.totalorder %s162, %s163
      %p177 = scmp.eq.s32.totalorder %s24, 1
      %p178 = por %p176, %p177
      %p180 = scmp.ne.s32.totalorder %s163, %s179
      %p181 = scmp.eq.s32.totalorder %s24, 0
      %p182 = por %p180, %p181
      %p183 = scmp.le.s32.totalorder 1, %s18
      %p184 = scmp.lt.s32.totalorder %s18, 3
      %p185 = pnand %p183, %p184
      %p186 = pneg %p185
      // Predicated region
      $region9: #{tpu_custom_call.1} parent=5 // pred_check
        _
      $region10: #{tpu_custom_call.1} parent=5 // pred_check_branch
        %188 = sbr.rel (%p185) target = $region12
      $region11: #{tpu_custom_call.1} parent=5 // pred_region
        %s189 = ssub.s32 %s18, 1
        // Predicated region
        $region13: #{tpu_custom_call.1} parent=11 // pred_check
          %p190 = pneg %p51
        $region14: #{tpu_custom_call.1} parent=11 // pred_check_branch
          %192 = sbr.rel (%p190) target = $region16
        $region15: #{tpu_custom_call.1} parent=11 // pred_region
          %s194 = ssub.s32 16, 16
          %195 = vsyncadd [#allocation4], %s194
          %s197 = sshll.u32 [#allocation3], 4
          %s198 = int_to_ptr.vmem [resolvable:$true] %s197
          %200 = dma.hbm_to_vmem [thread:$0]  %s0, 16, %s198, [#allocation4]
        $region16: #{tpu_custom_call.1} parent=11 // pred_fallthru
          _
        // Predicated region
        $region17: #{tpu_custom_call.1} parent=11 // pred_check
          %p201 = pneg %p72
        $region18: #{tpu_custom_call.1} parent=11 // pred_check_branch
          %203 = sbr.rel (%p201) target = $region20
        $region19: #{tpu_custom_call.1} parent=11 // pred_region
          _
        $region20: #{tpu_custom_call.1} parent=11 // pred_fallthru
          _
        // Predicated region
        $region21: #{tpu_custom_call.1} parent=11 // pred_check
          %p204 = pneg %p93
        $region22: #{tpu_custom_call.1} parent=11 // pred_check_branch
          %206 = sbr.rel (%p204) target = $region24
        $region23: #{tpu_custom_call.1} parent=11 // pred_region
          _
        $region24: #{tpu_custom_call.1} parent=11 // pred_fallthru
          _
      $region12: #{tpu_custom_call.1} parent=5 // pred_fallthru
        _
      %p207 = scmp.lt.s32.totalorder %s18, 2
      // Predicated region
      $region25: #{tpu_custom_call.1} parent=5 // pred_check
        %p208 = pneg %p207
      $region26: #{tpu_custom_call.1} parent=5 // pred_check_branch
        %210 = sbr.rel (%p208) target = $region28
      $region27: #{tpu_custom_call.1} parent=5 // pred_region
        // Predicated region
        $region29: #{tpu_custom_call.1} parent=27 // pred_check
          %p211 = pneg %p115
        $region30: #{tpu_custom_call.1} parent=27 // pred_check_branch
          %213 = sbr.rel (%p211) target = $region32
        $region31: #{tpu_custom_call.1} parent=27 // pred_region
          %s214 = sand.u32 %s18, 1
          %s215 = scalar_lea.sflag [#allocation7], %s214
          %s216 = sand.u32 %s105, 1
          %s217 = smul.addr %s216, 8
          %s218 = scalar_lea.vmem [#allocation6], %s217
          %s219 = sadd.s32 %s25, %s26
          %s221 = ssub.s32 128, 128
          %222 = vsyncadd %s215, %s221
          %s223 = smul.addr %s219, 128
          %s224 = scalar_lea.hbm %s3, %s223
          %s226 = sshll.u32 %s218, 4
          %s227 = int_to_ptr.vmem [resolvable:$true] %s226
          %229 = dma.hbm_to_vmem [thread:$0]  %s224, 128, %s227, %s215
        $region32: #{tpu_custom_call.1} parent=27 // pred_fallthru
          _
        // Predicated region
        $region33: #{tpu_custom_call.1} parent=27 // pred_check
          %p230 = pneg %p143
        $region34: #{tpu_custom_call.1} parent=27 // pred_check_branch
          %232 = sbr.rel (%p230) target = $region36
        $region35: #{tpu_custom_call.1} parent=27 // pred_region
          %s233 = sand.u32 %s18, 1
          %s234 = scalar_lea.sflag [#allocation7], %s233
          %s235 = sand.u32 %s133, 1
          %s236 = smul.addr %s235, 8
          %s237 = scalar_lea.vmem [#allocation8], %s236
          %s238 = sadd.s32 %s25, %s26
          %s240 = ssub.s32 128, 128
          %241 = vsyncadd %s234, %s240
          %s242 = smul.addr %s238, 128
          %s243 = scalar_lea.hbm %s4, %s242
          %s245 = sshll.u32 %s237, 4
          %s246 = int_to_ptr.vmem [resolvable:$true] %s245
          %248 = dma.hbm_to_vmem [thread:$0]  %s243, 128, %s246, %s234
        $region36: #{tpu_custom_call.1} parent=27 // pred_fallthru
          _
      $region28: #{tpu_custom_call.1} parent=5 // pred_fallthru
        _
      %p249 = scmp.le.s32.totalorder 1, %s18
      %p250 = scmp.lt.s32.totalorder %s18, 3
      %p251 = pnand %p249, %p250
      %p252 = pneg %p251
      // Predicated region
      $region37: #{tpu_custom_call.1} parent=5 // pred_check
        _
      $region38: #{tpu_custom_call.1} parent=5 // pred_check_branch
        %254 = sbr.rel (%p251) target = $region40
      $region39: #{tpu_custom_call.1} parent=5 // pred_region
        %s255 = ssub.s32 %s18, 1
        // Predicated region
        $region41: #{tpu_custom_call.1} parent=39 // pred_check
          %p256 = pneg %p51
        $region42: #{tpu_custom_call.1} parent=39 // pred_check_branch
          %258 = sbr.rel (%p256) target = $region44
        $region43: #{tpu_custom_call.1} parent=39 // pred_region
          %259 = dma.done [#allocation4], 16
        $region44: #{tpu_custom_call.1} parent=39 // pred_fallthru
          _
        %s260 = sand.u32 %s23, 1
        %s261 = scalar_lea.sflag [#allocation7], %s260
        %s262 = sand.u32 %s108, 1
        %s263 = smul.addr %s262, 8
        %s264 = scalar_lea.vmem [#allocation6], %s263
        // Predicated region
        $region45: #{tpu_custom_call.1} parent=39 // pred_check
          %p265 = pneg %p121
        $region46: #{tpu_custom_call.1} parent=39 // pred_check_branch
          %267 = sbr.rel (%p265) target = $region48
        $region47: #{tpu_custom_call.1} parent=39 // pred_region
          %268 = dma.done %s261, 128
        $region48: #{tpu_custom_call.1} parent=39 // pred_fallthru
          _
        %s269 = sand.u32 %s23, 1
        %s270 = scalar_lea.sflag [#allocation7], %s269
        %s271 = sand.u32 %s136, 1
        %s272 = smul.addr %s271, 8
        %s273 = scalar_lea.vmem [#allocation8], %s272
        // Predicated region
        $region49: #{tpu_custom_call.1} parent=39 // pred_check
          %p274 = pneg %p149
        $region50: #{tpu_custom_call.1} parent=39 // pred_check_branch
          %276 = sbr.rel (%p274) target = $region52
        $region51: #{tpu_custom_call.1} parent=39 // pred_region
          %277 = dma.done %s270, 128
        $region52: #{tpu_custom_call.1} parent=39 // pred_fallthru
          _
        %p278 = pneg %p51
        %p279 = pneg %p48
        %p280 = pneg %p72
        %p281 = pneg %p69
        %p282 = pneg %p93
        %p283 = pneg %p90
        %s284 = sand.u32 %s23, 1
        %s285 = scalar_lea.sflag [#allocation7], %s284
        %s286 = sand.u32 %s108, 1
        %s287 = smul.addr %s286, 8
        %s288 = scalar_lea.vmem [#allocation6], %s287
        %p289 = pneg %p121
        %p290 = pneg %p118
        %s291 = sand.u32 %s23, 1
        %s292 = scalar_lea.sflag [#allocation7], %s291
        %s293 = sand.u32 %s136, 1
        %s294 = smul.addr %s293, 8
        %s295 = scalar_lea.vmem [#allocation8], %s294
        %p296 = pneg %p149
        %p297 = pneg %p146
        %p298 = pneg %p175
        %p299 = pneg %p172
        %s300 = sand.u32 %s162, 1
        %s301 = scalar_lea.sflag [#allocation5], %s300
        %s302 = sand.u32 %s162, 1
        %s303 = smul.addr %s302, 8
        %s304 = scalar_lea.vmem [#allocation9], %s303
        %s305 = sadd.s32 %s27, %s28
        %s306 = sadd.s32 %s27, %s28
        %p307 = scmp.eq.s32.totalorder %s28, 0
        // Predicated region
        $region53: #{tpu_custom_call.1} parent=39 // pred_check
          %p308 = pneg %p307
        $region54: #{tpu_custom_call.1} parent=39 // pred_check_branch
          %310 = sbr.rel (%p308) target = $region56
        $region55: #{tpu_custom_call.1} parent=39 // pred_region
          %311 = vst [vmem:[#allocation2] sm:$0xff] 0.0
        $region56: #{tpu_custom_call.1} parent=39 // pred_fallthru
          _
        %v312 = vld [vmem:[%s264] sm:$0xff]
        %v313 = vld [vmem:[%s273] sm:$0xff]
        %v314 = vsub.f32 %v312, %v313
        %v315 = vmul.f32 %v314, %v314
        %v316 = vld [vmem:[#allocation2] sm:$0xff]
        %v317 = vadd.f32 %v315, 0.0
        %v318 = vadd.f32 %v316, %v317
        %319 = vst [vmem:[#allocation2] sm:$0xff] %v318
        // Predicated region
        $region57: #{tpu_custom_call.1} parent=39 // pred_check
          %p320 = pneg %p307
        $region58: #{tpu_custom_call.1} parent=39 // pred_check_branch
          %322 = sbr.rel (%p320) target = $region60
        $region59: #{tpu_custom_call.1} parent=39 // pred_region
          %v323 = vld [vmem:[#allocation2] sm:$0xff]
          %324 = vadd.xlane.f32.xlu0 %v323
          %v325 = vpop.xlane.xlu0 %324
          %v326 = vrot.slane %v325, 4
          %v327 = vadd.f32 %v325, %v326
          %v328 = vrot.slane %v327, 2
          %v329 = vadd.f32 %v327, %v328
          %v330 = vrot.slane %v329, 1
          %v331 = vadd.f32 %v329, %v330
          %s332 = vtos %v331
          %p333 = scmp.eq.s32.totalorder %s27, 0
          // Predicated region
          $region61: #{tpu_custom_call.1} parent=59 // pred_check
            %p334 = pneg %p333
          $region62: #{tpu_custom_call.1} parent=59 // pred_check_branch
            %336 = sbr.rel (%p334) target = $region64
          $region63: #{tpu_custom_call.1} parent=59 // pred_region
            %v337 = vld [vmem:[#allocation3] sm:$0x1]
            %338 = vrot.lane.b32.xlu0 %v337, 1
            %v339 = vpop.permute.xlu0 %338
            %v340 = vsub.s32 %v337, %v339
            %v341 = vcvt.s32.f32 %v340
            %v342 = vld [vmem:[%s1] sm:$0x1]
            %v343 = vld [vmem:[%s2] sm:$0x1]
            %v344 = vsub.f32 %v342, %v343
            %v345 = vmul.f32 %v344, %v344
            %v346 = vrcp.pop %v341
            %348 = vrot.lane.b32.xlu0 %v346, 127
            %v349 = vpop.permute.xlu0 %348
            %v351 = vmul.f32 %v345, %v349
            %vm352 = vcmask 8192
            %v353 = vsel %vm352, %v351, 0.0
            %354 = vadd.xlane.f32.xlu0 %v353
            %v355 = vpop.xlane.xlu0 %354
            %v356 = vrot.slane %v355, 4
            %v357 = vadd.f32 %v355, %v356
            %v358 = vrot.slane %v357, 2
            %v359 = vadd.f32 %v357, %v358
            %v360 = vrot.slane %v359, 1
            %v361 = vadd.f32 %v359, %v360
            %s362 = vtos %v361
            %s363 = smul.f32 %s362, 2.25
            %s364 = smul.f32 %s332, 0.49
            %s365 = sadd.f32 %s363, %s364
            %s366 = smul.f32 %s365, 0.125
            %v367 = vstv %s366
            %368 = vst [vmem:[%s304] sm:$0xff] %v367
          $region64: #{tpu_custom_call.1} parent=59 // pred_fallthru
            _
          %p369 = scmp.ne.s32.totalorder %s27, 0
          // Predicated region
          $region65: #{tpu_custom_call.1} parent=59 // pred_check
            %p370 = pneg %p369
          $region66: #{tpu_custom_call.1} parent=59 // pred_check_branch
            %372 = sbr.rel (%p370) target = $region68
          $region67: #{tpu_custom_call.1} parent=59 // pred_region
            %s373 = smul.f32 %s332, 0.49
            %s374 = smul.f32 %s373, 0.125
            %v375 = vstv %s374
            %376 = vst [vmem:[%s304] sm:$0xff] %v375
          $region68: #{tpu_custom_call.1} parent=59 // pred_fallthru
            _
        $region60: #{tpu_custom_call.1} parent=39 // pred_fallthru
          _
        %s377 = sand.u32 %s162, 1
        %s378 = scalar_lea.sflag [#allocation5], %s377
        %s379 = sand.u32 %s162, 1
        %s380 = smul.addr %s379, 8
        %s381 = scalar_lea.vmem [#allocation9], %s380
        // Predicated region
        $region69: #{tpu_custom_call.1} parent=39 // pred_check
          %p382 = pneg %p172
        $region70: #{tpu_custom_call.1} parent=39 // pred_check_branch
          %384 = sbr.rel (%p382) target = $region72
        $region71: #{tpu_custom_call.1} parent=39 // pred_region
          %s386 = ssub.s32 128, 128
          %387 = vsyncadd %s378, %s386
          %s388 = smul.addr %s27, 128
          %s389 = scalar_lea.hbm %s5, %s388
          %s391 = sshll.u32 %s381, 4
          %s392 = int_to_ptr.vmem [resolvable:$true] %s391
          %394 = dma.vmem_to_hbm [thread:$0]  %s392, 128, %s389, %s378
        $region72: #{tpu_custom_call.1} parent=39 // pred_fallthru
          _
      $region40: #{tpu_custom_call.1} parent=5 // pred_fallthru
        _
      %p395 = scmp.le.s32.totalorder 2, %s18
      // Predicated region
      $region73: #{tpu_custom_call.1} parent=5 // pred_check
        %p396 = pneg %p395
      $region74: #{tpu_custom_call.1} parent=5 // pred_check_branch
        %398 = sbr.rel (%p396) target = $region76
      $region75: #{tpu_custom_call.1} parent=5 // pred_region
        %s399 = ssub.s32 %s18, 2
        // Predicated region
        $region77: #{tpu_custom_call.1} parent=75 // pred_check
          %p400 = pneg %p178
        $region78: #{tpu_custom_call.1} parent=75 // pred_check_branch
          %402 = sbr.rel (%p400) target = $region80
        $region79: #{tpu_custom_call.1} parent=75 // pred_region
          %s403 = sand.u32 %s163, 1
          %s404 = scalar_lea.sflag [#allocation5], %s403
          %s405 = sand.u32 %s163, 1
          %s406 = smul.addr %s405, 8
          %s407 = scalar_lea.vmem [#allocation9], %s406
          %408 = dma.done %s404, 128
        $region80: #{tpu_custom_call.1} parent=75 // pred_fallthru
          _
      $region76: #{tpu_custom_call.1} parent=5 // pred_fallthru
        _
    $region6: #{tpu_custom_call.1} parent=1 // loop_footer
      %s22 = sadd.s32 1, %s18
    $region7: #{tpu_custom_call.1} parent=1 // loop_footer_branch
      %17 = sbr.rel target = $region3
    $region8: #{tpu_custom_call.1} parent=1 // loop_exit
      _
    %409 = vsyncpa [#allocation4], 1
    %s410 = scalar_lea.sflag [#allocation4], 1
    %411 = vsyncpa %s410, 1
    %412 = vsyncpa [#allocation7], 1
    %s413 = scalar_lea.sflag [#allocation7], 1
    %414 = vsyncpa %s413, 1
    %415 = vsyncpa [#allocation5], 1
    %s416 = scalar_lea.sflag [#allocation5], 1
    %417 = vsyncpa %s416, 1

</llo_original>
